<compile_context>
chip_gen: v7x
topology: tpu7x:2x2x1
jax: 0.10.0
libtpu: 0.0.40
codegen_flags: <defaults>
</compile_context>

<pallas_src>
import jax
import jax.numpy as jnp
from jax.experimental import pallas as pl
from jax.experimental.pallas import tpu as pltpu


def _rope_kernel(x_ref, cos_ref, sin_e_ref, sin_o_ref, o_ref):
    # x_ref / o_ref: (TM, TL) lane-dense tiles; tables: (1, TL), row-broadcast.
    x = x_ref[...].astype(jnp.float32)          # f32 math (free: HBM-bound)
    tl = x.shape[-1]
    # pltpu.roll follows jnp.roll semantics but needs non-negative shifts:
    #   roll(x, tl-1)[j] == x[(j+1) % tl]   ("next" element)
    #   roll(x, 1)[j]    == x[(j-1) % tl]   ("previous" element)
    # Wraparound elements only ever multiply zeros in sin_e / sin_o (tl even).
    x_next = pltpu.roll(x, tl - 1, axis=1)
    x_prev = pltpu.roll(x, 1, axis=1)
    out = x * cos_ref[...] + x_next * sin_e_ref[...] + x_prev * sin_o_ref[...]
    o_ref[...] = out.astype(o_ref.dtype)


def _choose_tiles(rows: int, L: int, itemsize: int, target_bytes: int):
    """Pick (tm, tl): rows per step and lane-width per step.

    tl always divides L, is even and (when < L) a multiple of 128, so the
    parity-masked roll trick stays valid and blocks are never lane-partial.
    tm is a multiple of the packed sublane height (or the full row count).
    """
    sub = max(8, 32 // itemsize)          # packed vreg height: f32 8, bf16 16, int8 32
    row_bytes = L * itemsize

    # ---- L (lane) axis: tile only if a minimal-height full-width tile would
    # already exceed the target (long-sequence case). -------------------------
    if row_bytes * sub <= target_bytes:
        tl = L
    else:
        want = max(128, target_bytes // (sub * itemsize))
        tl = None
        t = (want // 128) * 128
        while t >= 128:
            if L % t == 0:
                tl = t
                break
            t -= 128
        if tl is None:
            # TODO(synk): no multiple-of-128 divisor of L; fall back to full rows.
            tl = L

    # ---- row (sublane) axis --------------------------------------------------
    tile_row_bytes = tl * itemsize
    tm = max(1, target_bytes // tile_row_bytes)
    if tm >= rows:
        tm = rows                          # single full block (always legal)
    else:
        tm = max(sub, (tm // sub) * sub)   # partial blocks must be pack-aligned
        tm = min(tm, rows)

    # Prefer an even number of row steps when there is more than one, so a
    # 2-TensorCore part (v7x) splits the streaming evenly.  Never force a
    # split of small problems (single-TC v5e/v6e would only pay overhead).
    n_row = -(-rows // tm)
    while n_row > 1 and (n_row % 2 == 1) and tm > sub:
        tm -= sub
        n_row = -(-rows // tm)
    return tm, tl


def rope_pallas(x: jax.Array, inv_freq: jax.Array,
                *, target_tile_bytes: int = 4 << 20) -> jax.Array:
    """Apply interleaved RoPE to x of shape (B, H, S, D)."""
    B, H, S, D = x.shape
    assert D % 2 == 0 and inv_freq.shape == (D // 2,)
    rows, L = B * H, S * D

    # --- tiny f32 sin/cos tables (glue JAX, computed once) -------------------
    positions = jnp.arange(S, dtype=jnp.float32)
    sinusoid = positions[:, None] * inv_freq.astype(jnp.float32)[None, :]  # (S, D//2)
    sin = jnp.sin(sinusoid)
    cos = jnp.cos(sinusoid)
    cos_full = jnp.repeat(cos, 2, axis=-1)                 # cos_i at lanes 2i, 2i+1
    sin_rep = jnp.repeat(sin, 2, axis=-1)
    lane_even = (jnp.arange(D) % 2) == 0
    # out[2i]   needs  -sin_i * x[2i+1]  -> sin_even nonzero only on even lanes
    # out[2i+1] needs  +sin_i * x[2i]    -> sin_odd  nonzero only on odd lanes
    sin_even = jnp.where(lane_even[None, :], -sin_rep, 0.0)
    sin_odd = jnp.where(lane_even[None, :], 0.0, sin_rep)
    cos_full = cos_full.reshape(1, L).astype(jnp.float32)
    sin_even = sin_even.reshape(1, L).astype(jnp.float32)
    sin_odd = sin_odd.reshape(1, L).astype(jnp.float32)

    # --- lane-dense layout + two-level tiling --------------------------------
    xf = x.reshape(rows, L)
    tm, tl = _choose_tiles(rows, L, xf.dtype.itemsize, target_tile_bytes)
    n_row = -(-rows // tm)
    n_col = L // tl

    def table_spec(index_map):
        # Grid-invariant along rows; single-buffered (no pointless double buffer).
        return pl.BlockSpec((1, tl), index_map, pipeline_mode=pl.Buffered(1))

    if n_col == 1:
        grid = (n_row,)
        x_spec = pl.BlockSpec((tm, tl), lambda i: (i, 0))
        out_spec = pl.BlockSpec((tm, tl), lambda i: (i, 0))
        tab = table_spec(lambda i: (0, 0))
        dims = ("parallel",)
    else:
        # L-tile as the OUTER grid axis: each table tile is DMA'd exactly once,
        # instead of once per row step.
        grid = (n_col, n_row)
        x_spec = pl.BlockSpec((tm, tl), lambda j, i: (i, j))
        out_spec = pl.BlockSpec((tm, tl), lambda j, i: (i, j))
        tab = table_spec(lambda j, i: (0, j))
        dims = ("parallel", "parallel")

    out = pl.pallas_call(
        _rope_kernel,
        out_shape=jax.ShapeDtypeStruct((rows, L), x.dtype),
        grid=grid,
        in_specs=[x_spec, tab, tab, tab],
        out_specs=out_spec,
        compiler_params=pltpu.CompilerParams(
            dimension_semantics=dims,
            # >= the 16 MiB v5e scoped default, well under v7x's 64 MiB physical.
            vmem_limit_bytes=48 * 1024 * 1024,
        ),
    )(xf, cos_full, sin_even, sin_odd)

    return out.reshape(B, H, S, D)


def rope_reference(x: jax.Array, inv_freq: jax.Array) -> jax.Array:
    """Pure-JAX reference matching the PyTorch module exactly."""
    B, H, S, D = x.shape
    positions = jnp.arange(S, dtype=jnp.float32)
    sinusoid = positions[:, None] * inv_freq[None, :]
    sin = jnp.sin(sinusoid)[None, None]
    cos = jnp.cos(sinusoid)[None, None]
    x_rot = x.reshape(B, H, S, D // 2, 2)
    x1, x2 = x_rot[..., 0], x_rot[..., 1]
    rotated = jnp.stack([x1 * cos - x2 * sin, x1 * sin + x2 * cos], axis=-1)
    return rotated.reshape(B, H, S, D)


if __name__ == "__main__":
    # Small shapes consistent with the module's forward: (B, H, S, head_dim)
    B, H, S, D = 2, 4, 16, 32

    key = jax.random.PRNGKey(0)
    x = jax.random.normal(key, (B, H, S, D), dtype=jnp.float32)

    # Deterministic "buffer" init, exactly as in __init__:
    # inv_freq = 1 / 10000 ** (arange(0, dim, 2) / dim)
    inv_freq = 1.0 / (10000.0 ** (jnp.arange(0, D, 2, dtype=jnp.float32) / D))

    ref = rope_reference(x, inv_freq)

    # Default path (single lane tile, full rows per step).
    out = jax.block_until_ready(rope_pallas(x, inv_freq))
    assert out.shape == (B, H, S, D)
    assert jnp.allclose(out, ref, atol=1e-5, rtol=1e-5), "mismatch vs reference"

    # Exercise the L-tiled / 2-axis-grid path too (tiny target forces tiling).
    out2 = jax.block_until_ready(rope_pallas(x, inv_freq, target_tile_bytes=8 * 1024))
    assert jnp.allclose(out2, ref, atol=1e-5, rtol=1e-5), "mismatch (L-tiled path)"

    print("KERNEL_OK")
</pallas_src>

<mosaic_0001>
module attributes {stable_mosaic.version = 11 : i64} {
  func.func @_rope_kernel(%arg0: i32, %arg1: memref<8x512xf32, #tpu.memory_space<vmem>>, %arg2: memref<1x512xf32, #tpu.memory_space<vmem>>, %arg3: memref<1x512xf32, #tpu.memory_space<vmem>>, %arg4: memref<1x512xf32, #tpu.memory_space<vmem>>, %arg5: memref<8x512xf32, #tpu.memory_space<vmem>>) attributes {dimension_semantics = [#tpu.dimension_semantics<parallel>], iteration_bounds = array<i64: 1>, scalar_prefetch = 0 : i64, scratch_operands = 0 : i64, tpu.core_type = #tpu.core_type<tc>, window_params = [{transform_indices = @transform_0, window_bounds = array<i64: 8, 512>}, {pipeline_mode = #tpu.pipeline_mode<synchronous>, transform_indices = @transform_1, window_bounds = array<i64: 1, 512>}, {pipeline_mode = #tpu.pipeline_mode<synchronous>, transform_indices = @transform_2, window_bounds = array<i64: 1, 512>}, {pipeline_mode = #tpu.pipeline_mode<synchronous>, transform_indices = @transform_3, window_bounds = array<i64: 1, 512>}, {transform_indices = @transform_4, window_bounds = array<i64: 8, 512>}]} {
    %c0 = arith.constant 0 : index
    %c0_0 = arith.constant 0 : index
    %0 = vector.load %arg1[%c0, %c0_0] : memref<8x512xf32, #tpu.memory_space<vmem>>, vector<8x512xf32>
    %c511_i32 = arith.constant 511 : i32
    %1 = tpu.dynamic_rotate %0 by %c511_i32 dim 1 : vector<8x512xf32>, i32 -> vector<8x512xf32>
    %c1_i32 = arith.constant 1 : i32
    %2 = tpu.dynamic_rotate %0 by %c1_i32 dim 1 : vector<8x512xf32>, i32 -> vector<8x512xf32>
    %c0_1 = arith.constant 0 : index
    %c0_2 = arith.constant 0 : index
    %3 = vector.load %arg2[%c0_1, %c0_2] : memref<1x512xf32, #tpu.memory_space<vmem>>, vector<1x512xf32>
    %4 = vector.broadcast %3 : vector<1x512xf32> to vector<8x512xf32>
    %5 = arith.mulf %0, %4 : vector<8x512xf32>
    %c0_3 = arith.constant 0 : index
    %c0_4 = arith.constant 0 : index
    %6 = vector.load %arg3[%c0_3, %c0_4] : memref<1x512xf32, #tpu.memory_space<vmem>>, vector<1x512xf32>
    %7 = vector.broadcast %6 : vector<1x512xf32> to vector<8x512xf32>
    %8 = arith.mulf %1, %7 : vector<8x512xf32>
    %9 = arith.addf %5, %8 : vector<8x512xf32>
    %c0_5 = arith.constant 0 : index
    %c0_6 = arith.constant 0 : index
    %10 = vector.load %arg4[%c0_5, %c0_6] : memref<1x512xf32, #tpu.memory_space<vmem>>, vector<1x512xf32>
    %11 = vector.broadcast %10 : vector<1x512xf32> to vector<8x512xf32>
    %12 = arith.mulf %2, %11 : vector<8x512xf32>
    %13 = arith.addf %9, %12 : vector<8x512xf32>
    %c0_7 = arith.constant 0 : index
    %c0_8 = arith.constant 0 : index
    %14 = vector.load %arg5[%c0_7, %c0_8] : memref<8x512xf32, #tpu.memory_space<vmem>>, vector<8x512xf32>
    tpu.vector_store %arg5[%c0_7, %c0_8], %13 {strides = array<i32>} : memref<8x512xf32, #tpu.memory_space<vmem>>, vector<8x512xf32>,
    return
  }
  func.func @transform_0(%arg0: i32) -> (i32, i32) {
    %c0_i32 = arith.constant 0 : i32
    %c0_i32_0 = arith.constant 0 : i32
    return %arg0, %c0_i32 : i32, i32
  }
  func.func @transform_1(%arg0: i32) -> (i32, i32) {
    %c0_i32 = arith.constant 0 : i32
    %c0_i32_0 = arith.constant 0 : i32
    %c0_i32_1 = arith.constant 0 : i32
    return %c0_i32, %c0_i32_0 : i32, i32
  }
  func.func @transform_2(%arg0: i32) -> (i32, i32) {
    %c0_i32 = arith.constant 0 : i32
    %c0_i32_0 = arith.constant 0 : i32
    %c0_i32_1 = arith.constant 0 : i32
    return %c0_i32, %c0_i32_0 : i32, i32
  }
  func.func @transform_3(%arg0: i32) -> (i32, i32) {
    %c0_i32 = arith.constant 0 : i32
    %c0_i32_0 = arith.constant 0 : i32
    %c0_i32_1 = arith.constant 0 : i32
    return %c0_i32, %c0_i32_0 : i32, i32
  }
  func.func @transform_4(%arg0: i32) -> (i32, i32) {
    %c0_i32 = arith.constant 0 : i32
    %c0_i32_0 = arith.constant 0 : i32
    return %arg0, %c0_i32 : i32, i32
  }
}

</mosaic_0001>

<llo_original>
// kernel: tpu_custom_call.1
$region0: #{tpu_custom_call.1}
  #allocation0 [shape = 'u32[]', space=smem, size = 0x4, offset = 0x4, fixed_abs, tag = 'smem constant byte address 0x4 - core index']
  #allocation1 [shape = 'u32[144,128]{1,0:T(1,128)}', space=vmem, size = 0x12000, scoped, tag = 'internal scratch']
  %s0 = inlined_call_operand.hbm [shape: f32[8,512], index: 0, kind: input, shape index: {}]
  %s1 = inlined_call_operand.hbm [shape: f32[1,512], index: 1, kind: input, shape index: {}]
  %s2 = inlined_call_operand.vmem [shape: f32[1,512], index: 2, kind: input, shape index: {}]
  %s3 = inlined_call_operand.vmem [shape: f32[1,512], index: 3, kind: input, shape index: {}]
  %s4 = inlined_call_operand.hbm [shape: f32[8,512], index: 4, kind: output, shape index: {}]
  %s5 = sld [smem:[#allocation0]]
  $region34: #{tpu_custom_call.1} parent=0
    _
  %s7 = ssub.s32 1, %s5
  %s8 = scalar_select 0, %s7, %s5
  $region1: #{tpu_custom_call.1} parent=0
    #allocation2 [shape = 'u8[16384]{0}', space=vmem, size = 0x4000, scoped, tag = 'input window, operand 0, single buffered']
    #allocation3 [shape = 's32[1]{0}', space=sflag, size = 0x4, scoped, tag = 'scoped memory for tpu_custom_call.1']
    #allocation4 [shape = 's32[1]{0}', space=sflag, size = 0x4, scoped, tag = 'scoped memory for tpu_custom_call.1']
    #allocation5 [shape = 'u8[2048]{0}', space=vmem, size = 0x800, scoped, tag = 'input window, operand 1, single buffered']
    #allocation6 [shape = 's32[1]{0}', space=sflag, size = 0x4, scoped, tag = 'scoped memory for tpu_custom_call.1']
    #allocation7 [shape = 'u8[16384]{0}', space=vmem, size = 0x4000, scoped, tag = 'output window, operand 0, single buffered']
    %9 = vsyncpa [#allocation3], 0
    %10 = vsyncpa [#allocation6], 0
    %11 = vsyncpa [#allocation4], 0
    // Predicated region
    $region2: #{tpu_custom_call.1} parent=1 // pred_check
      _
    $region3: #{tpu_custom_call.1} parent=1 // pred_check_branch
      %13 = sbr.rel (0) target = $region5
    $region4: #{tpu_custom_call.1} parent=1 // pred_region
      %s15 = ssub.s32 512, 512
      %16 = vsyncadd [#allocation3], %s15
      %s18 = sshll.u32 [#allocation2], 4
      %s19 = int_to_ptr.vmem [resolvable:$true] %s18
      %21 = dma.hbm_to_vmem [thread:$0]  %s0, 512, %s19, [#allocation3]
    $region5: #{tpu_custom_call.1} parent=1 // pred_fallthru
      _
    // Predicated region
    $region6: #{tpu_custom_call.1} parent=1 // pred_check
      _
    $region7: #{tpu_custom_call.1} parent=1 // pred_check_branch
      %23 = sbr.rel (0) target = $region9
    $region8: #{tpu_custom_call.1} parent=1 // pred_region
      %s25 = ssub.s32 64, 64
      %26 = vsyncadd [#allocation6], %s25
      %s28 = sshll.u32 [#allocation5], 4
      %s29 = int_to_ptr.vmem [resolvable:$true] %s28
      %31 = dma.hbm_to_vmem [thread:$0]  %s1, 64, %s29, [#allocation6]
    $region9: #{tpu_custom_call.1} parent=1 // pred_fallthru
      _
    // Predicated region
    $region10: #{tpu_custom_call.1} parent=1 // pred_check
      _
    $region11: #{tpu_custom_call.1} parent=1 // pred_check_branch
      %33 = sbr.rel (0) target = $region13
    $region12: #{tpu_custom_call.1} parent=1 // pred_region
      _
    $region13: #{tpu_custom_call.1} parent=1 // pred_fallthru
      _
    // Predicated region
    $region14: #{tpu_custom_call.1} parent=1 // pred_check
      _
    $region15: #{tpu_custom_call.1} parent=1 // pred_check_branch
      %35 = sbr.rel (0) target = $region17
    $region16: #{tpu_custom_call.1} parent=1 // pred_region
      _
    $region17: #{tpu_custom_call.1} parent=1 // pred_fallthru
      _
    // Predicated region
    $region18: #{tpu_custom_call.1} parent=1 // pred_check
      _
    $region19: #{tpu_custom_call.1} parent=1 // pred_check_branch
      %37 = sbr.rel (0) target = $region21
    $region20: #{tpu_custom_call.1} parent=1 // pred_region
      %38 = dma.done [#allocation3], 512
    $region21: #{tpu_custom_call.1} parent=1 // pred_fallthru
      _
    // Predicated region
    $region22: #{tpu_custom_call.1} parent=1 // pred_check
      _
    $region23: #{tpu_custom_call.1} parent=1 // pred_check_branch
      %40 = sbr.rel (0) target = $region25
    $region24: #{tpu_custom_call.1} parent=1 // pred_region
      %41 = dma.done [#allocation6], 64
    $region25: #{tpu_custom_call.1} parent=1 // pred_fallthru
      _
    %v42 = vld [vmem:[#allocation2] sm:$0xff]
    %v43 = vld [vmem:[#allocation2 + $0x8] sm:$0xff]
    %v44 = vld [vmem:[#allocation2 + $0x10] sm:$0xff]
    %v45 = vld [vmem:[#allocation2 + $0x18] sm:$0xff]
    %46 = vrot.lane.b32.xlu0 %v42, 127
    %v47 = vpop.permute.xlu0 %46
    %48 = vrot.lane.b32.xlu0 %v43, 127
    %v49 = vpop.permute.xlu0 %48
    %50 = vrot.lane.b32.xlu0 %v44, 127
    %v51 = vpop.permute.xlu0 %50
    %52 = vrot.lane.b32.xlu0 %v45, 127
    %v53 = vpop.permute.xlu0 %52
    %v54 = vlaneseq
    %v55 = vand.u32 %v54, 127
    %vm56 = vcmp.lt.s32.totalorder %v55, 127
    %v57 = vsel %vm56, %v51, %v53
    %v58 = vsel %vm56, %v49, %v51
    %v59 = vsel %vm56, %v47, %v49
    %v60 = vsel %vm56, %v53, %v47
    %61 = vrot.lane.b32.xlu0 %v42, 1
    %v62 = vpop.permute.xlu0 %61
    %63 = vrot.lane.b32.xlu0 %v43, 1
    %v64 = vpop.permute.xlu0 %63
    %65 = vrot.lane.b32.xlu0 %v44, 1
    %v66 = vpop.permute.xlu0 %65
    %67 = vrot.lane.b32.xlu0 %v45, 1
    %v68 = vpop.permute.xlu0 %67
    %vm69 = vcmp.lt.s32.totalorder %v55, 1
    %v70 = vsel %vm69, %v66, %v68
    %v71 = vsel %vm69, %v64, %v66
    %v72 = vsel %vm69, %v62, %v64
    %v73 = vsel %vm69, %v68, %v62
    %v74 = vld [vmem:[#allocation5] sm:$0xf]
    %v76 = vlaneseq
    %v77 = vshrl.u32 %v76, 7
    %v78 = vsub.s32 0, %v77
    %v79 = vrot.slane %v74, %v78
    %v80 = vlaneseq
    %v81 = vshrl.u32 %v80, 7
    %v82 = vsub.s32 1, %v81
    %v83 = vrot.slane %v74, %v82
    %v84 = vlaneseq
    %v85 = vshrl.u32 %v84, 7
    %v86 = vsub.s32 2, %v85
    %v87 = vrot.slane %v74, %v86
    %v88 = vlaneseq
    %v89 = vshrl.u32 %v88, 7
    %v90 = vsub.s32 3, %v89
    %v91 = vrot.slane %v74, %v90
    %v96 = vmul.f32 %v42, %v79
    %v97 = vmul.f32 %v43, %v83
    %v98 = vmul.f32 %v44, %v87
    %v99 = vmul.f32 %v45, %v91
    %v100 = vld [vmem:[%s2] sm:$0xf]
    %v102 = vlaneseq
    %v103 = vshrl.u32 %v102, 7
    %v104 = vsub.s32 0, %v103
    %v105 = vrot.slane %v100, %v104
    %v106 = vlaneseq
    %v107 = vshrl.u32 %v106, 7
    %v108 = vsub.s32 1, %v107
    %v109 = vrot.slane %v100, %v108
    %v110 = vlaneseq
    %v111 = vshrl.u32 %v110, 7
    %v112 = vsub.s32 2, %v111
    %v113 = vrot.slane %v100, %v112
    %v114 = vlaneseq
    %v115 = vshrl.u32 %v114, 7
    %v116 = vsub.s32 3, %v115
    %v117 = vrot.slane %v100, %v116
    %v122 = vmul.f32 %v59, %v105
    %v123 = vmul.f32 %v58, %v109
    %v124 = vmul.f32 %v57, %v113
    %v125 = vmul.f32 %v60, %v117
    %v126 = vadd.f32 %v96, %v122
    %v127 = vadd.f32 %v97, %v123
    %v128 = vadd.f32 %v98, %v124
    %v129 = vadd.f32 %v99, %v125
    %v130 = vld [vmem:[%s3] sm:$0xf]
    %v132 = vlaneseq
    %v133 = vshrl.u32 %v132, 7
    %v134 = vsub.s32 0, %v133
    %v135 = vrot.slane %v130, %v134
    %v136 = vlaneseq
    %v137 = vshrl.u32 %v136, 7
    %v138 = vsub.s32 1, %v137
    %v139 = vrot.slane %v130, %v138
    %v140 = vlaneseq
    %v141 = vshrl.u32 %v140, 7
    %v142 = vsub.s32 2, %v141
    %v143 = vrot.slane %v130, %v142
    %v144 = vlaneseq
    %v145 = vshrl.u32 %v144, 7
    %v146 = vsub.s32 3, %v145
    %v147 = vrot.slane %v130, %v146
    %v152 = vmul.f32 %v73, %v135
    %v153 = vmul.f32 %v72, %v139
    %v154 = vmul.f32 %v71, %v143
    %v155 = vmul.f32 %v70, %v147
    %v156 = vadd.f32 %v126, %v152
    %v157 = vadd.f32 %v127, %v153
    %v158 = vadd.f32 %v128, %v154
    %v159 = vadd.f32 %v129, %v155
    %160 = vst [vmem:[#allocation7] sm:$0xff] %v156
    %161 = vst [vmem:[#allocation7 + $0x8] sm:$0xff] %v157
    %162 = vst [vmem:[#allocation7 + $0x10] sm:$0xff] %v158
    %163 = vst [vmem:[#allocation7 + $0x18] sm:$0xff] %v159
    // Predicated region
    $region26: #{tpu_custom_call.1} parent=1 // pred_check
      _
    $region27: #{tpu_custom_call.1} parent=1 // pred_check_branch
      %165 = sbr.rel (0) target = $region29
    $region28: #{tpu_custom_call.1} parent=1 // pred_region
      %s167 = ssub.s32 512, 512
      %168 = vsyncadd [#allocation4], %s167
      %s170 = sshll.u32 [#allocation7], 4
      %s171 = int_to_ptr.vmem [resolvable:$true] %s170
      %173 = dma.vmem_to_hbm [thread:$0]  %s171, 512, %s4, [#allocation4]
    $region29: #{tpu_custom_call.1} parent=1 // pred_fallthru
      _
    // Predicated region
    $region30: #{tpu_custom_call.1} parent=1 // pred_check
      _
    $region31: #{tpu_custom_call.1} parent=1 // pred_check_branch
      %175 = sbr.rel (0) target = $region33
    $region32: #{tpu_custom_call.1} parent=1 // pred_region
      %176 = dma.done [#allocation4], 512
    $region33: #{tpu_custom_call.1} parent=1 // pred_fallthru
      _
    %177 = vsyncpa [#allocation3], 1
    %178 = vsyncpa [#allocation6], 1
    %179 = vsyncpa [#allocation4], 1

</llo_original>
